<compile_context>
chip_gen: v6e
topology: v6e:2x2x1
jax: 0.10.0
libtpu: 0.0.40
codegen_flags: <defaults>
</compile_context>

<pallas_src>
import functools

import jax
import jax.numpy as jnp
import numpy as np
from jax.experimental import pallas as pl
from jax.experimental.pallas import tpu as pltpu


# --------------------------------------------------------------------------- utils
def _divisor_tile(dim, cap, base):
    """Largest tile <= cap dividing `dim` (multiple of `base`); full extent if dim <= cap."""
    if dim <= cap:
        return dim
    t = (cap // base) * base
    while t >= base:
        if dim % t == 0:
            return t
        t -= base
    return dim


# ---------------------------------------------------- embedding + positional encoding
def _embed_posenc_kernel(ids_ref, tab_ref, invf_ref, phase_ref, o_ref, *,
                         seq_len, scale, tile_r):
    row0 = pl.program_id(0) * tile_r
    vocab = tab_ref.shape[0]
    row = row0 + jax.lax.broadcasted_iota(jnp.int32, (tile_r, 1), 0)
    pos = (row % seq_len).astype(jnp.float32)                    # (tile_r, 1)
    # single transcendental per element; inv_freq/phase are hoisted (1, D) rows
    pe = jnp.sin(pos * invf_ref[...] + phase_ref[...])           # (tile_r, D)
    # embedding lookup as one-hot @ table (exact selection on the MXU)
    col = jax.lax.broadcasted_iota(jnp.int32, (tile_r, vocab), 1)
    onehot = (col == ids_ref[...]).astype(jnp.float32)           # (tile_r, vocab)
    emb = jnp.dot(onehot, tab_ref[...], preferred_element_type=jnp.float32)
    o_ref[...] = emb * scale + pe


def embed_with_posenc(ids, emb_table, max_seq_len):
    B, S = ids.shape
    V, D = emb_table.shape
    assert S == max_seq_len, "x += PE(max_seq_len, D) requires seq_len == max_seq_len"
    R = B * S
    ids2 = ids.reshape(R, 1).astype(jnp.int32)
    # pe[p, i] = sin(p * 10000**(-2*i/D) + (i % 2) * pi/2)  (quirky raw-index exponent,
    # even cols -> sin, odd cols -> cos, exactly as in the PyTorch module)
    i = np.arange(D, dtype=np.float64)
    inv_freq = np.power(10000.0, -2.0 * i / D).astype(np.float32).reshape(1, D)
    phase = ((i % 2) * (np.pi / 2.0)).astype(np.float32).reshape(1, D)
    tile_r = _divisor_tile(R, 512, 8)
    return pl.pallas_call(
        functools.partial(_embed_posenc_kernel, seq_len=S,
                          scale=float(np.sqrt(D)), tile_r=tile_r),
        out_shape=jax.ShapeDtypeStruct((R, D), jnp.float32),
        grid=(R // tile_r,),
        in_specs=[pl.BlockSpec((tile_r, 1), lambda r: (r, 0)),
                  pl.BlockSpec((V, D), lambda r: (0, 0)),
                  pl.BlockSpec((1, D), lambda r: (0, 0)),
                  pl.BlockSpec((1, D), lambda r: (0, 0))],
        out_specs=pl.BlockSpec((tile_r, D), lambda r: (r, 0)),
        compiler_params=pltpu.CompilerParams(dimension_semantics=("parallel",)),
    )(ids2, emb_table, jnp.asarray(inv_freq), jnp.asarray(phase))


# --------------------------------------------------------------------------- linear
def _linear_kernel(x_ref, w_ref, b_ref, o_ref, acc_ref, *, apply_relu):
    @pl.when(pl.program_id(2) == 0)
    def _():
        acc_ref[...] = jnp.zeros_like(acc_ref)

    acc_ref[...] += jnp.dot(x_ref[...], w_ref[...],
                            preferred_element_type=jnp.float32)

    @pl.when(pl.program_id(2) == pl.num_programs(2) - 1)
    def _():
        r = acc_ref[...] + b_ref[...]
        if apply_relu:
            r = jnp.maximum(r, 0.0)
        o_ref[...] = r.astype(o_ref.dtype)


def linear(x, w, b=None, *, relu=False, tm_cap=256, tn_cap=512, tk_cap=512):
    M, K = x.shape
    Kw, N = w.shape
    assert K == Kw
    bias = (jnp.zeros((1, N), jnp.float32) if b is None
            else b.reshape(1, N).astype(jnp.float32))
    tm = _divisor_tile(M, tm_cap, 8)
    tn = _divisor_tile(N, tn_cap, 128)
    tk = _divisor_tile(K, tk_cap, 128)
    grid = (M // tm, N // tn, K // tk)
    return pl.pallas_call(
        functools.partial(_linear_kernel, apply_relu=relu),
        out_shape=jax.ShapeDtypeStruct((M, N), jnp.float32),
        grid=grid,
        in_specs=[pl.BlockSpec((tm, tk), lambda i, j, k: (i, k)),
                  pl.BlockSpec((tk, tn), lambda i, j, k: (k, j)),
                  pl.BlockSpec((1, tn), lambda i, j, k: (0, j))],
        out_specs=pl.BlockSpec((tm, tn), lambda i, j, k: (i, j)),
        scratch_shapes=[pltpu.VMEM((tm, tn), jnp.float32)],
        compiler_params=pltpu.CompilerParams(
            dimension_semantics=("parallel", "parallel", "arbitrary")),
    )(x, w, bias)


# ------------------------------------------------------------------- attention core
def _sdpa_kernel(q_ref, k_ref, v_ref, o_ref, *, scale):
    q = q_ref[0]                                 # (Lq, dk)
    k = k_ref[0]                                 # (Lk, dk)
    v = v_ref[0]                                 # (Lk, dv)
    s = jax.lax.dot_general(q, k, (((1,), (1,)), ((), ())),
                            preferred_element_type=jnp.float32) * scale
    m = jnp.max(s, axis=-1, keepdims=True)
    p = jnp.exp(s - m)
    p = p / jnp.sum(p, axis=-1, keepdims=True)
    o_ref[0] = jnp.dot(p, v, preferred_element_type=jnp.float32).astype(o_ref.dtype)


def scaled_dot_product_attention(q, k, v, k_dim):
    BH, Lq, dq = q.shape
    _, Lk, dk = k.shape
    _, Lv, dv = v.shape
    scale = 1.0 / float(np.sqrt(k_dim))
    return pl.pallas_call(
        functools.partial(_sdpa_kernel, scale=scale),
        out_shape=jax.ShapeDtypeStruct((BH, Lq, dv), jnp.float32),
        grid=(BH,),
        in_specs=[pl.BlockSpec((1, Lq, dq), lambda h: (h, 0, 0)),
                  pl.BlockSpec((1, Lk, dk), lambda h: (h, 0, 0)),
                  pl.BlockSpec((1, Lv, dv), lambda h: (h, 0, 0))],
        out_specs=pl.BlockSpec((1, Lq, dv), lambda h: (h, 0, 0)),
        compiler_params=pltpu.CompilerParams(dimension_semantics=("parallel",)),
    )(q, k, v)


# ----------------------------------------------------------- residual add + layernorm
def _add_layernorm_kernel(x_ref, r_ref, g_ref, b_ref, o_ref, *, eps):
    y = x_ref[...] + r_ref[...]
    mean = jnp.mean(y, axis=-1, keepdims=True)
    yc = y - mean
    var = jnp.mean(yc * yc, axis=-1, keepdims=True)
    inv = jax.lax.rsqrt(var + eps)
    o_ref[...] = (yc * inv * g_ref[...] + b_ref[...]).astype(o_ref.dtype)


def add_layernorm(x, res, gamma, beta, eps=1e-6):
    R, D = x.shape
    tr = _divisor_tile(R, 512, 8)
    return pl.pallas_call(
        functools.partial(_add_layernorm_kernel, eps=eps),
        out_shape=jax.ShapeDtypeStruct((R, D), jnp.float32),
        grid=(R // tr,),
        in_specs=[pl.BlockSpec((tr, D), lambda i: (i, 0)),
                  pl.BlockSpec((tr, D), lambda i: (i, 0)),
                  pl.BlockSpec((1, D), lambda i: (0, 0)),
                  pl.BlockSpec((1, D), lambda i: (0, 0))],
        out_specs=pl.BlockSpec((tr, D), lambda i: (i, 0)),
        compiler_params=pltpu.CompilerParams(dimension_semantics=("parallel",)),
    )(x, res, gamma.reshape(1, D), beta.reshape(1, D))


# ------------------------------------------------------------------- final softmax
def _softmax_kernel(x_ref, o_ref):
    x = x_ref[...]
    m = jnp.max(x, axis=-1, keepdims=True)
    e = jnp.exp(x - m)
    o_ref[...] = (e / jnp.sum(e, axis=-1, keepdims=True)).astype(o_ref.dtype)


def softmax_lastdim(x):
    R, V = x.shape
    tr = _divisor_tile(R, 256, 8)
    return pl.pallas_call(
        _softmax_kernel,
        out_shape=jax.ShapeDtypeStruct((R, V), jnp.float32),
        grid=(R // tr,),
        in_specs=[pl.BlockSpec((tr, V), lambda i: (i, 0))],
        out_specs=pl.BlockSpec((tr, V), lambda i: (i, 0)),
        compiler_params=pltpu.CompilerParams(dimension_semantics=("parallel",)),
    )(x)


# ------------------------------------------------------------------ model assembly
def _mha_pallas(xq, xk, xv, p, cfg, B, Lq, Lk, Lv):
    H, dq, dk, dv = cfg["n_heads"], cfg["q_dim"], cfg["k_dim"], cfg["v_dim"]
    q = linear(xq, p["wq"])                                   # (B*Lq, H*dq)
    k = linear(xk, p["wk"])
    v = linear(xv, p["wv"])
    q = q.reshape(B, Lq, H, dq).transpose(0, 2, 1, 3).reshape(B * H, Lq, dq)
    k = k.reshape(B, Lk, H, dk).transpose(0, 2, 1, 3).reshape(B * H, Lk, dk)
    v = v.reshape(B, Lv, H, dv).transpose(0, 2, 1, 3).reshape(B * H, Lv, dv)
    attn = scaled_dot_product_attention(q, k, v, dk)          # (B*H, Lq, dv)
    attn = attn.reshape(B, H, Lq, dv).transpose(0, 2, 1, 3).reshape(B * Lq, H * dv)
    return linear(attn, p["wo"])


def decoder_forward(cfg, params, decoder_input_ids, encoder_output):
    B, S = decoder_input_ids.shape
    D = cfg["model_dim"]
    x = embed_with_posenc(decoder_input_ids, params["emb_table"], cfg["max_seq_len"])
    enc = encoder_output.reshape(B * S, D)
    lp = params["layer"]
    for _ in range(cfg["N"]):                                  # shared-weight layer, N times
        res = x
        attn = _mha_pallas(x, x, x, lp["masked_mha"], cfg, B, S, S, S)
        v = add_layernorm(attn, res, lp["ln_g"], lp["ln_b"])   # dropout == identity
        res = v
        attn = _mha_pallas(enc, enc, v, lp["cross_mha"], cfg, B, S, S, S)
        out = add_layernorm(attn, res, lp["ln_g"], lp["ln_b"])
        res = out
        h = linear(out, lp["w1"], lp["b1"], relu=True)         # FFN with fused ReLU
        f = linear(h, lp["w2"], lp["b2"])
        x = add_layernorm(f, res, lp["ln_g"], lp["ln_b"])
    logits = linear(x, params["w_vocab"])                      # (B*S, vocab)
    probs = softmax_lastdim(logits)
    return probs.reshape(B, S, -1)


# ---------------------------------------------------------------------- reference
def _reference_forward(cfg, params, ids, enc_out):
    B, S = ids.shape
    D = cfg["model_dim"]
    H, dq, dk, dv = cfg["n_heads"], cfg["q_dim"], cfg["k_dim"], cfg["v_dim"]
    PREC = jax.lax.Precision.HIGHEST
    mm = lambda a, b: jnp.matmul(a, b, precision=PREC)

    x = params["emb_table"][ids] * np.sqrt(D)
    pe = np.array([[p / np.power(10000, 2 * i / D) for i in range(D)]
                   for p in range(S)])
    pe[:, 0::2] = np.sin(pe[:, 0::2])
    pe[:, 1::2] = np.cos(pe[:, 1::2])
    x = x + jnp.asarray(pe, jnp.float32)[None, :, :]

    def mha(xq, xk, xv, p):
        Lq, Lk, Lv = xq.shape[1], xk.shape[1], xv.shape[1]
        q = mm(xq, p["wq"]).reshape(B, Lq, H, dq).transpose(0, 2, 1, 3)
        k = mm(xk, p["wk"]).reshape(B, Lk, H, dk).transpose(0, 2, 1, 3)
        v = mm(xv, p["wv"]).reshape(B, Lv, H, dv).transpose(0, 2, 1, 3)
        s = jnp.einsum("bhqd,bhkd->bhqk", q, k, precision=PREC) / np.sqrt(dk)
        a = jax.nn.softmax(s, axis=-1)
        o = jnp.einsum("bhqk,bhkd->bhqd", a, v, precision=PREC)
        o = o.transpose(0, 2, 1, 3).reshape(B, Lq, H * dv)
        return mm(o, p["wo"])

    def layer_norm(y, g, b):
        m = jnp.mean(y, axis=-1, keepdims=True)
        var = jnp.mean((y - m) ** 2, axis=-1, keepdims=True)
        return (y - m) / jnp.sqrt(var + 1e-6) * g + b

    lp = params["layer"]
    for _ in range(cfg["N"]):
        res = x
        attn = mha(x, x, x, lp["masked_mha"])
        v = layer_norm(attn + res, lp["ln_g"], lp["ln_b"])
        res = v
        attn = mha(enc_out, enc_out, v, lp["cross_mha"])
        out = layer_norm(attn + res, lp["ln_g"], lp["ln_b"])
        res = out
        h = jnp.maximum(mm(out, lp["w1"]) + lp["b1"], 0.0)
        f = mm(h, lp["w2"]) + lp["b2"]
        x = layer_norm(f + res, lp["ln_g"], lp["ln_b"])

    logits = mm(x, params["w_vocab"])
    return jax.nn.softmax(logits, axis=-1)


# ------------------------------------------------------------------------- params
def init_params(cfg, key):
    D, V = cfg["model_dim"], cfg["vocab"]
    H, dq, dk, dv = cfg["n_heads"], cfg["q_dim"], cfg["k_dim"], cfg["v_dim"]
    hid = cfg["hid_dim"]
    ks = iter(jax.random.split(key, 20))
    r = lambda shape, s=0.05: jax.random.normal(next(ks), shape, jnp.float32) * s
    emb = r((V, D), 0.1).at[cfg["padding_idx"]].set(0.0)       # padding row zeroed

    def mha_params():
        return dict(wq=r((D, H * dq)), wk=r((D, H * dk)),
                    wv=r((D, H * dv)), wo=r((H * dv, D)))

    layer = dict(
        masked_mha=mha_params(),
        cross_mha=mha_params(),
        ln_g=1.0 + r((D,), 0.05),
        ln_b=r((D,), 0.05),
        w1=r((D, hid)), b1=r((hid,), 0.05),
        w2=r((hid, D)), b2=r((D,), 0.05),
    )
    return dict(emb_table=emb, layer=layer, w_vocab=r((D, V)))


if __name__ == "__main__":
    cfg = dict(vocab=256, model_dim=128, n_heads=4, q_dim=32, k_dim=32, v_dim=32,
               hid_dim=256, max_seq_len=8, batch=2, N=2, padding_idx=0)
    key = jax.random.PRNGKey(0)
    kp, ki, ke = jax.random.split(key, 3)
    params = init_params(cfg, kp)

    B, S, D = cfg["batch"], cfg["max_seq_len"], cfg["model_dim"]
    decoder_input = jax.random.randint(ki, (B, S), 0, cfg["vocab"], dtype=jnp.int32)
    encoder_output = jax.random.normal(ke, (B, S, D), jnp.float32) * 0.5

    out = decoder_forward(cfg, params, decoder_input, encoder_output)
    out = jax.block_until_ready(out)

    ref = jax.block_until_ready(_reference_forward(cfg, params, decoder_input, encoder_output))
    np.testing.assert_allclose(np.asarray(out), np.asarray(ref), rtol=2e-2, atol=1e-4)

    print("KERNEL_OK")
</pallas_src>

<mosaic_0001>
module attributes {stable_mosaic.version = 11 : i64} {
  func.func @_embed_posenc_kernel(%arg0: i32, %arg1: memref<16x1xi32, #tpu.memory_space<vmem>>, %arg2: memref<256x128xf32, #tpu.memory_space<vmem>>, %arg3: memref<1x128xf32, #tpu.memory_space<vmem>>, %arg4: memref<1x128xf32, #tpu.memory_space<vmem>>, %arg5: memref<16x128xf32, #tpu.memory_space<vmem>>) attributes {dimension_semantics = [#tpu.dimension_semantics<parallel>], iteration_bounds = array<i64: 1>, scalar_prefetch = 0 : i64, scratch_operands = 0 : i64, tpu.core_type = #tpu.core_type<tc>, window_params = [{transform_indices = @transform_0, window_bounds = array<i64: 16, 1>}, {pipeline_mode = #tpu.pipeline_mode<synchronous>, transform_indices = @transform_1, window_bounds = array<i64: 256, 128>}, {pipeline_mode = #tpu.pipeline_mode<synchronous>, transform_indices = @transform_2, window_bounds = array<i64: 1, 128>}, {pipeline_mode = #tpu.pipeline_mode<synchronous>, transform_indices = @transform_3, window_bounds = array<i64: 1, 128>}, {transform_indices = @transform_4, window_bounds = array<i64: 16, 128>}]} {
    %c16_i32 = arith.constant 16 : i32
    %0 = arith.muli %arg0, %c16_i32 : i32
    %1 = tpu.iota {dimensions = array<i32: 0>} : vector<16x1xi32>
    %2 = vector.broadcast %0 : i32 to vector<16x1xi32>
    %3 = arith.addi %2, %1 : vector<16x1xi32>
    %c8_i32 = arith.constant 8 : i32
    %c0_i32 = arith.constant 0 : i32
    %4 = arith.cmpi eq, %c8_i32, %c0_i32 : i32
    %c1_i32 = arith.constant 1 : i32
    %5 = arith.select %4, %c1_i32, %c8_i32 : i32
    %6 = vector.broadcast %5 : i32 to vector<16x1xi32>
    %7 = arith.remsi %3, %6 : vector<16x1xi32>
    %c0_i32_0 = arith.constant 0 : i32
    %8 = vector.broadcast %c0_i32_0 : i32 to vector<16x1xi32>
    %9 = arith.cmpi ne, %7, %8 : vector<16x1xi32>
    %c0_i32_1 = arith.constant 0 : i32
    %10 = vector.broadcast %c0_i32_1 : i32 to vector<16x1xi32>
    %11 = arith.cmpi slt, %7, %10 : vector<16x1xi32>
    %c0_i32_2 = arith.constant 0 : i32
    %12 = arith.cmpi slt, %5, %c0_i32_2 : i32
    %13 = vector.broadcast %12 : i1 to vector<16x1xi1>
    %14 = vector.broadcast %13 : vector<16x1xi1> to vector<16x1xi1>
    %15 = arith.xori %11, %14 : vector<16x1xi1>
    %16 = arith.andi %15, %9 : vector<16x1xi1>
    %17 = vector.broadcast %5 : i32 to vector<16x1xi32>
    %18 = arith.addi %7, %17 : vector<16x1xi32>
    %19 = arith.select %16, %18, %7 : vector<16x1xi1>, vector<16x1xi32>
    %20 = arith.sitofp %19 : vector<16x1xi32> to vector<16x1xf32>
    %c0 = arith.constant 0 : index
    %c0_3 = arith.constant 0 : index
    %21 = vector.load %arg3[%c0, %c0_3] : memref<1x128xf32, #tpu.memory_space<vmem>>, vector<1x128xf32>
    %22 = vector.broadcast %20 : vector<16x1xf32> to vector<16x128xf32>
    %23 = vector.broadcast %21 : vector<1x128xf32> to vector<16x128xf32>
    %24 = arith.mulf %22, %23 : vector<16x128xf32>
    %c0_4 = arith.constant 0 : index
    %c0_5 = arith.constant 0 : index
    %25 = vector.load %arg4[%c0_4, %c0_5] : memref<1x128xf32, #tpu.memory_space<vmem>>, vector<1x128xf32>
    %26 = vector.broadcast %25 : vector<1x128xf32> to vector<16x128xf32>
    %27 = arith.addf %24, %26 : vector<16x128xf32>
    %28 = math.sin %27 : vector<16x128xf32>
    %29 = tpu.iota {dimensions = array<i32: 1>} : vector<16x256xi32>
    %c0_6 = arith.constant 0 : index
    %c0_7 = arith.constant 0 : index
    %30 = vector.load %arg1[%c0_6, %c0_7] : memref<16x1xi32, #tpu.memory_space<vmem>>, vector<16x1xi32>
    %31 = vector.broadcast %30 : vector<16x1xi32> to vector<16x256xi32>
    %32 = arith.cmpi eq, %29, %31 : vector<16x256xi32>
    %33 = arith.extui %32 : vector<16x256xi1> to vector<16x256xi32>
    %34 = arith.sitofp %33 : vector<16x256xi32> to vector<16x256xf32>
    %c0_8 = arith.constant 0 : index
    %c0_9 = arith.constant 0 : index
    %35 = vector.load %arg2[%c0_8, %c0_9] : memref<256x128xf32, #tpu.memory_space<vmem>>, vector<256x128xf32>
    %cst = arith.constant dense<0.000000e+00> : vector<16x128xf32>
    %36 = tpu.matmul %34, %35, %cst {dimension_numbers = #tpu.dot_dimension_numbers<[1], [0], [0], [1], [0, 0, 1, 1], [], []>} : vector<16x256xf32>, vector<256x128xf32>, vector<16x128xf32> -> vector<16x128xf32>
    %cst_10 = arith.constant 11.3137083 : f32
    %37 = vector.broadcast %cst_10 : f32 to vector<16x128xf32>
    %38 = arith.mulf %36, %37 : vector<16x128xf32>
    %39 = arith.addf %38, %28 : vector<16x128xf32>
    %c0_11 = arith.constant 0 : index
    %c0_12 = arith.constant 0 : index
    %40 = vector.load %arg5[%c0_11, %c0_12] : memref<16x128xf32, #tpu.memory_space<vmem>>, vector<16x128xf32>
    tpu.vector_store %arg5[%c0_11, %c0_12], %39 {strides = array<i32>} : memref<16x128xf32, #tpu.memory_space<vmem>>, vector<16x128xf32>,
    return
  }
  func.func @transform_0(%arg0: i32) -> (i32, i32) {
    %c0_i32 = arith.constant 0 : i32
    %c0_i32_0 = arith.constant 0 : i32
    return %arg0, %c0_i32 : i32, i32
  }
  func.func @transform_1(%arg0: i32) -> (i32, i32) {
    %c0_i32 = arith.constant 0 : i32
    %c0_i32_0 = arith.constant 0 : i32
    %c0_i32_1 = arith.constant 0 : i32
    return %c0_i32, %c0_i32_0 : i32, i32
  }
  func.func @transform_2(%arg0: i32) -> (i32, i32) {
    %c0_i32 = arith.constant 0 : i32
    %c0_i32_0 = arith.constant 0 : i32
    %c0_i32_1 = arith.constant 0 : i32
    return %c0_i32, %c0_i32_0 : i32, i32
  }
  func.func @transform_3(%arg0: i32) -> (i32, i32) {
    %c0_i32 = arith.constant 0 : i32
    %c0_i32_0 = arith.constant 0 : i32
    %c0_i32_1 = arith.constant 0 : i32
    return %c0_i32, %c0_i32_0 : i32, i32
  }
  func.func @transform_4(%arg0: i32) -> (i32, i32) {
    %c0_i32 = arith.constant 0 : i32
    %c0_i32_0 = arith.constant 0 : i32
    return %arg0, %c0_i32 : i32, i32
  }
}

</mosaic_0001>

<llo_original>
// kernel: tpu_custom_call.1
$region0: #{tpu_custom_call.1}
  #allocation0 [shape = 'u32[]', space=smem, size = 0x4, offset = 0x4, fixed_abs, tag = 'smem constant byte address 0x4 - core index']
  #allocation1 [shape = 'u32[144,128]{1,0:T(1,128)}', space=vmem, size = 0x12000, scoped, tag = 'internal scratch']
  %s0 = inlined_call_operand.vmem [shape: s32[16,1], index: 0, kind: input, shape index: {}]
  %s1 = inlined_call_operand.hbm [shape: f32[256,128], index: 1, kind: input, shape index: {}]
  %s2 = inlined_call_operand.vmem [shape: f32[1,128], index: 2, kind: input, shape index: {}]
  %s3 = inlined_call_operand.vmem [shape: f32[1,128], index: 3, kind: input, shape index: {}]
  %s4 = inlined_call_operand.hbm [shape: f32[16,128], index: 4, kind: output, shape index: {}]
  %s5 = sld [smem:[#allocation0]]
  $region30: #{tpu_custom_call.1} parent=0
    _
  %s7 = ssub.s32 1, %s5
  %s8 = scalar_select 0, %s7, %s5
  $region1: #{tpu_custom_call.1} parent=0
    #allocation2 [shape = 'u8[131072]{0}', space=vmem, size = 0x20000, scoped, tag = 'input window, operand 1, single buffered']
    #allocation3 [shape = 's32[1]{0}', space=sflag, size = 0x4, scoped, tag = 'scoped memory for tpu_custom_call.1']
    #allocation4 [shape = 's32[1]{0}', space=sflag, size = 0x4, scoped, tag = 'scoped memory for tpu_custom_call.1']
    #allocation5 [shape = 'u8[8192]{0}', space=vmem, size = 0x2000, scoped, tag = 'output window, operand 0, single buffered']
    %9 = vsyncpa [#allocation3], 0
    %10 = vsyncpa [#allocation4], 0
    // Predicated region
    $region2: #{tpu_custom_call.1} parent=1 // pred_check
      _
    $region3: #{tpu_custom_call.1} parent=1 // pred_check_branch
      %12 = sbr.rel (0) target = $region5
    $region4: #{tpu_custom_call.1} parent=1 // pred_region
      _
    $region5: #{tpu_custom_call.1} parent=1 // pred_fallthru
      _
    // Predicated region
    $region6: #{tpu_custom_call.1} parent=1 // pred_check
      _
    $region7: #{tpu_custom_call.1} parent=1 // pred_check_branch
      %14 = sbr.rel (0) target = $region9
    $region8: #{tpu_custom_call.1} parent=1 // pred_region
      %s16 = ssub.s32 4096, 4096
      %17 = vsyncadd [#allocation3], %s16
      %s18 = sshll.u32 [#allocation2], 4
      %s19 = int_to_ptr.vmem [resolvable:$true] %s18
      %24 = dma.hbm_to_vmem [thread:$0]  %s1, 4096, %s19, [#allocation3], 128, 128, 8
    $region9: #{tpu_custom_call.1} parent=1 // pred_fallthru
      _
    // Predicated region
    $region10: #{tpu_custom_call.1} parent=1 // pred_check
      _
    $region11: #{tpu_custom_call.1} parent=1 // pred_check_branch
      %26 = sbr.rel (0) target = $region13
    $region12: #{tpu_custom_call.1} parent=1 // pred_region
      _
    $region13: #{tpu_custom_call.1} parent=1 // pred_fallthru
      _
    // Predicated region
    $region14: #{tpu_custom_call.1} parent=1 // pred_check
      _
    $region15: #{tpu_custom_call.1} parent=1 // pred_check_branch
      %28 = sbr.rel (0) target = $region17
    $region16: #{tpu_custom_call.1} parent=1 // pred_region
      _
    $region17: #{tpu_custom_call.1} parent=1 // pred_fallthru
      _
    // Predicated region
    $region18: #{tpu_custom_call.1} parent=1 // pred_check
      _
    $region19: #{tpu_custom_call.1} parent=1 // pred_check_branch
      %30 = sbr.rel (0) target = $region21
    $region20: #{tpu_custom_call.1} parent=1 // pred_region
      %31 = dma.done [#allocation3], 4096
    $region21: #{tpu_custom_call.1} parent=1 // pred_fallthru
      _
    %s32 = smul.u32 0, 16
    %v33 = vlaneseq
    %v34 = vshrl.u32 %v33, 7
    %v35 = vadd.s32 %v34, 8
    %v36 = vstv %s32
    %v37 = vadd.s32 %v36, %v34
    %v38 = vadd.s32 %v36, %v35
    %vm39 = vcmp.lt.s32.totalorder %v37, 0
    %v40 = vsub.s32 0, %v37
    %v41 = vsel %vm39, %v40, %v37
    %v42 = vshrl.u32 %v41, 3
    %v43 = vand.u32 %v41, 7
    %v44 = vsub.s32 0, %v43
    %v45 = vsel %vm39, %v44, %v43
    %vm46 = vcmp.lt.s32.totalorder %v38, 0
    %v47 = vsub.s32 0, %v38
    %v48 = vsel %vm46, %v47, %v38
    %v49 = vshrl.u32 %v48, 3
    %v50 = vand.u32 %v48, 7
    %v51 = vsub.s32 0, %v50
    %v52 = vsel %vm46, %v51, %v50
    %vm53 = vcmp.ne.s32.totalorder %v45, 0
    %vm54 = vcmp.ne.s32.totalorder %v52, 0
    %vm55 = vcmp.lt.s32.totalorder %v45, 0
    %vm56 = vcmp.lt.s32.totalorder %v52, 0
    %vm57 = vmand %vm55, %vm53
    %vm58 = vmand %vm56, %vm54
    %v59 = vadd.s32 %v45, 8
    %v60 = vadd.s32 %v52, 8
    %v61 = vsel %vm57, %v59, %v45
    %v62 = vsel %vm58, %v60, %v52
    %v63 = vcvt.s32.f32 %v61
    %v64 = vcvt.s32.f32 %v62
    %v65 = vld [vmem:[%s2] sm:$0x1]
    %v67 = vlaneseq
    %v68 = vshrl.u32 %v67, 7
    %v69 = vsub.s32 0, %v68
    %v70 = vrot.slane %v65, %v69
    %v72 = vmul.f32 %v63, %v70
    %v73 = vmul.f32 %v64, %v70
    %v74 = vld [vmem:[%s3] sm:$0x1]
    %v76 = vlaneseq
    %v77 = vshrl.u32 %v76, 7
    %v78 = vsub.s32 0, %v77
    %v79 = vrot.slane %v74, %v78
    %v81 = vadd.f32 %v72, %v79
    %v82 = vadd.f32 %v73, %v79
    %v83 = vand.u32 2147483647, %v81
    %vm84 = vcmp.le.f32.partialorder %v83, 0.7853982
    %vm85 = vcmp.lt.s32.totalorder %v81, 0
    %v86 = vand.u32 %v81, 2139095040
    %v87 = vshrl.u32 %v86, 23
    %v88 = vsub.s32 %v87, 127
    %v89 = vand.u32 2147483647, %v81
    %v90 = vand.u32 %v89, 8388607
    %v91 = vor.u32 %v90, 8388608
    %v92 = vsub.s32 0, %v91
    %v93 = vadd.s32 %v88, 1
    %vm94 = vcmp.gt.s32.totalorder %v93, 0
    %v95 = vsel %vm94, %v93, 0
    %v96 = vshrl.u32 %v95, 5
    %v97 = vand.u32 %v95, 31
    %v98 = vsub.s32 32, %v97
    %v99 = vshrl.u32 683565275, %v98
    %v100 = vshll.u32 683565275, %v97
    %v101 = vshrl.u32 2475754826, %v98
    %v102 = vor.u32 %v100, %v101
    %v103 = vshll.u32 2475754826, %v97
    %v104 = vshrl.u32 2131351028, %v98
    %v105 = vor.u32 %v103, %v104
    %v106 = vshll.u32 2131351028, %v97
    %v107 = vshrl.u32 2102212464, %v98
    %v108 = vor.u32 %v106, %v107
    %v109 = vshll.u32 2102212464, %v97
    %v110 = vshrl.u32 920167782, %v98
    %v111 = vor.u32 %v109, %v110
    %v112 = vshll.u32 920167782, %v97
    %v113 = vshrl.u32 1326507024, %v98
    %v114 = vor.u32 %v112, %v113
    %vm115 = vcmp.lt.s32.totalorder %v96, 1
    %vm116 = vcmp.lt.s32.totalorder %v96, 2
    %vm117 = vcmp.lt.s32.totalorder %v96, 3
    %vm118 = vcmp.lt.s32.totalorder %v96, 4
    %v119 = vsel %vm115, %v99, %v102
    %v120 = vsel %vm118, %v108, 2102212464
    %v121 = vsel %vm117, %v105, %v120
    %v122 = vsel %vm116, %v119, %v121
    %v123 = vsel %vm115, %v102, %v105
    %v124 = vsel %vm118, %v111, 920167782
    %v125 = vsel %vm117, %v108, %v124
    %v126 = vsel %vm116, %v123, %v125
    %v127 = vsel %vm115, %v105, %v108
    %v128 = vsel %vm118, %v114, 1326507024
    %v129 = vsel %vm117, %v111, %v128
    %v130 = vsel %vm116, %v127, %v129
    %v131 = vshll.u32 %v91, 8
    %v132 = vmul.u32.u64.compose %v131, %v130
    %v133 = vextract.low.u32 %v132
    %v134 = vextract.high.u32 %v132
    %v135 = vmul.u32.u64.compose %v131, %v126
    %v136 = vextract.low.u32 %v135
    %v137 = vextract.high.u32 %v135
    %v138 = vmul.u32 %v131, %v122
    %v139 = vadd.s32 %v134, %v136
    %vm140 = vc.u32 %v134, %v136
    %v141 = vadd.s32 %v137, 1
    %v142 = vsel %vm140, %v141, %v137
    %v143 = vadd.s32 %v138, %v142
    %v144 = vadd.s32 %v143, 536870912
    %v145 = vshrl.u32 %v144, 30
    %v146 = vshll.u32 %v145, 30
    %v147 = vsub.s32 %v143, %v146
    %vm148 = vcmp.lt.s32.totalorder %v147, 0
    %v149 = vsub.s32 0, %v147
    %v150 = vsel %vm148, %v149, %v147
    %v151 = vclz %v150
    %v152 = vsub.s32 %v151, 2
    %vm153 = vcmp.gt.s32.totalorder 0, %v152
    %v154 = vsel %vm153, 0, %v152
    %v155 = vsub.s32 32, %v154
    %v156 = vshll.u32 %v147, %v154
    %v157 = vshrl.u32 %v139, %v155
    %v158 = vor.u32 %v156, %v157
    %v159 = vsub.s32 4294967266, %v154
    %v160 = vadd.s32 %v159, 127
    %v161 = vshll.u32 %v160, 23
    %v162 = vor.u32 4788187, %v161
    %v163 = vand.u32 2147483647, %v162
    %v165 = vcvt.s32.f32 %v158
    %v166 = vmul.f32 %v165, %v163
    %v167 = vxor.u32 %v166, 2147483648
    %v168 = vsel %vm85, %v167, %v166
    %v169 = vsub.s32 4, %v145
    %v170 = vsel %vm85, %v169, %v145
    %v171 = vsel %vm84, %v81, %v168
    %v172 = vsel %vm84, 0, %v170
    %v173 = vcosq.f32.pop %v171
    %v174 = vsinq.f32.pop %v171
    %vm175 = vweird.f32 %v81
    %v176 = vadd.s32 %v172, 3
    %v177 = vand.u32 %v176, 3
    %vm178 = vcmp.lt.s32.totalorder %v177, 2
    %vm179 = vcmp.eq.s32.totalorder %v177, 0
    %v180 = vxor.u32 %v174, 2147483648
    %v181 = vsel %vm179, %v173, %v180
    %vm182 = vcmp.eq.s32.totalorder %v177, 2
    %v183 = vxor.u32 %v173, 2147483648
    %v184 = vsel %vm182, %v183, %v174
    %v185 = vsel %vm178, %v181, %v184
    %v186 = vsel %vm175, nan, %v185
    %v187 = vand.u32 2147483647, %v82
    %vm188 = vcmp.le.f32.partialorder %v187, 0.7853982
    %vm189 = vcmp.lt.s32.totalorder %v82, 0
    %v190 = vand.u32 %v82, 2139095040
    %v191 = vshrl.u32 %v190, 23
    %v192 = vsub.s32 %v191, 127
    %v193 = vand.u32 2147483647, %v82
    %v194 = vand.u32 %v193, 8388607
    %v195 = vor.u32 %v194, 8388608
    %v196 = vsub.s32 0, %v195
    %v197 = vadd.s32 %v192, 1
    %vm198 = vcmp.gt.s32.totalorder %v197, 0
    %v199 = vsel %vm198, %v197, 0
    %v200 = vshrl.u32 %v199, 5
    %v201 = vand.u32 %v199, 31
    %v202 = vsub.s32 32, %v201
    %v203 = vshrl.u32 683565275, %v202
    %v204 = vshll.u32 683565275, %v201
    %v205 = vshrl.u32 2475754826, %v202
    %v206 = vor.u32 %v204, %v205
    %v207 = vshll.u32 2475754826, %v201
    %v208 = vshrl.u32 2131351028, %v202
    %v209 = vor.u32 %v207, %v208
    %v210 = vshll.u32 2131351028, %v201
    %v211 = vshrl.u32 2102212464, %v202
    %v212 = vor.u32 %v210, %v211
    %v213 = vshll.u32 2102212464, %v201
    %v214 = vshrl.u32 920167782, %v202
    %v215 = vor.u32 %v213, %v214
    %v216 = vshll.u32 920167782, %v201
    %v217 = vshrl.u32 1326507024, %v202
    %v218 = vor.u32 %v216, %v217
    %vm219 = vcmp.lt.s32.totalorder %v200, 1
    %vm220 = vcmp.lt.s32.totalorder %v200, 2
    %vm221 = vcmp.lt.s32.totalorder %v200, 3
    %vm222 = vcmp.lt.s32.totalorder %v200, 4
    %v223 = vsel %vm219, %v203, %v206
    %v224 = vsel %vm222, %v212, 2102212464
    %v225 = vsel %vm221, %v209, %v224
    %v226 = vsel %vm220, %v223, %v225
    %v227 = vsel %vm219, %v206, %v209
    %v228 = vsel %vm222, %v215, 920167782
    %v229 = vsel %vm221, %v212, %v228
    %v230 = vsel %vm220, %v227, %v229
    %v231 = vsel %vm219, %v209, %v212
    %v232 = vsel %vm222, %v218, 1326507024
    %v233 = vsel %vm221, %v215, %v232
    %v234 = vsel %vm220, %v231, %v233
    %v235 = vshll.u32 %v195, 8
    %v236 = vmul.u32.u64.compose %v235, %v234
    %v237 = vextract.low.u32 %v236
    %v238 = vextract.high.u32 %v236
    %v239 = vmul.u32.u64.compose %v235, %v230
    %v240 = vextract.low.u32 %v239
    %v241 = vextract.high.u32 %v239
    %v242 = vmul.u32 %v235, %v226
    %v243 = vadd.s32 %v238, %v240
    %vm244 = vc.u32 %v238, %v240
    %v245 = vadd.s32 %v241, 1
    %v246 = vsel %vm244, %v245, %v241
    %v247 = vadd.s32 %v242, %v246
    %v248 = vadd.s32 %v247, 536870912
    %v249 = vshrl.u32 %v248, 30
    %v250 = vshll.u32 %v249, 30
    %v251 = vsub.s32 %v247, %v250
    %vm252 = vcmp.lt.s32.totalorder %v251, 0
    %v253 = vsub.s32 0, %v251
    %v254 = vsel %vm252, %v253, %v251
    %v255 = vclz %v254
    %v256 = vsub.s32 %v255, 2
    %vm257 = vcmp.gt.s32.totalorder 0, %v256
    %v258 = vsel %vm257, 0, %v256
    %v259 = vsub.s32 32, %v258
    %v260 = vshll.u32 %v251, %v258
    %v261 = vshrl.u32 %v243, %v259
    %v262 = vor.u32 %v260, %v261
    %v263 = vsub.s32 4294967266, %v258
    %v264 = vadd.s32 %v263, 127
    %v265 = vshll.u32 %v264, 23
    %v266 = vor.u32 4788187, %v265
    %v267 = vand.u32 2147483647, %v266
    %v269 = vcvt.s32.f32 %v262
    %v270 = vmul.f32 %v269, %v267
    %v271 = vxor.u32 %v270, 2147483648
    %v272 = vsel %vm189, %v271, %v270
    %v273 = vsub.s32 4, %v249
    %v274 = vsel %vm189, %v273, %v249
    %v275 = vsel %vm188, %v82, %v272
    %v276 = vsel %vm188, 0, %v274
    %v277 = vcosq.f32.pop %v275
    %v278 = vsinq.f32.pop %v275
    %vm279 = vweird.f32 %v82
    %v280 = vadd.s32 %v276, 3
    %v281 = vand.u32 %v280, 3
    %vm282 = vcmp.lt.s32.totalorder %v281, 2
    %vm283 = vcmp.eq.s32.totalorder %v281, 0
    %v284 = vxor.u32 %v278, 2147483648
    %v285 = vsel %vm283, %v277, %v284
    %vm286 = vcmp.eq.s32.totalorder %v281, 2
    %v287 = vxor.u32 %v277, 2147483648
    %v288 = vsel %vm286, %v287, %v278
    %v289 = vsel %vm282, %v285, %v288
    %v290 = vsel %vm279, nan, %v289
    %v291 = vlaneseq
    %v292 = vand.u32 %v291, 127
    %v293 = vadd.s32 %v292, 128
    %v294 = vld [vmem:[%s0] sm:$0xff]
    %v295 = vld [vmem:[%s0 + $0x8] sm:$0xff]
    %296 = vset.pattern.permute.xlu0 0
    %297 = vperm.xlu0 %296, %v294
    %v298 = vpop.permute.xlu0 %297
    %299 = vset.pattern.permute.xlu0 0
    %300 = vperm.xlu0 %299, %v295
    %v301 = vpop.permute.xlu0 %300
    %vm302 = vcmp.eq.s32.totalorder %v292, %v298
    %vm303 = vcmp.eq.s32.totalorder %v293, %v298
    %vm304 = vcmp.eq.s32.totalorder %v292, %v301
    %vm305 = vcmp.eq.s32.totalorder %v293, %v301
    %v306 = vsel %vm302, 1, 0
    %v307 = vsel %vm303, 1, 0
    %v308 = vsel %vm304, 1, 0
    %v309 = vsel %vm305, 1, 0
    %v310 = vcvt.s32.f32 %v306
    %v311 = vcvt.s32.f32 %v307
    %v312 = vcvt.s32.f32 %v308
    %v313 = vcvt.s32.f32 %v309
    %v314 = vld [vmem:[#allocation2] sm:$0xff]
    %v315 = vld [vmem:[#allocation2 + $0x8] sm:$0xff]
    %v316 = vld [vmem:[#allocation2 + $0x10] sm:$0xff]
    %v317 = vld [vmem:[#allocation2 + $0x18] sm:$0xff]
    %v318 = vld [vmem:[#allocation2 + $0x20] sm:$0xff]
    %v319 = vld [vmem:[#allocation2 + $0x28] sm:$0xff]
    %v320 = vld [vmem:[#allocation2 + $0x30] sm:$0xff]
    %v321 = vld [vmem:[#allocation2 + $0x38] sm:$0xff]
    %v322 = vld [vmem:[#allocation2 + $0x40] sm:$0xff]
    %v323 = vld [vmem:[#allocation2 + $0x48] sm:$0xff]
    %v324 = vld [vmem:[#allocation2 + $0x50] sm:$0xff]
    %v325 = vld [vmem:[#allocation2 + $0x58] sm:$0xff]
    %v326 = vld [vmem:[#allocation2 + $0x60] sm:$0xff]
    %v327 = vld [vmem:[#allocation2 + $0x68] sm:$0xff]
    %v328 = vld [vmem:[#allocation2 + $0x70] sm:$0xff]
    %v329 = vld [vmem:[#allocation2 + $0x78] sm:$0xff]
    %v330 = vld [vmem:[#allocation2 + $0x80] sm:$0xff]
    %v331 = vld [vmem:[#allocation2 + $0x88] sm:$0xff]
    %v332 = vld [vmem:[#allocation2 + $0x90] sm:$0xff]
    %v333 = vld [vmem:[#allocation2 + $0x98] sm:$0xff]
    %v334 = vld [vmem:[#allocation2 + $0xa0] sm:$0xff]
    %v335 = vld [vmem:[#allocation2 + $0xa8] sm:$0xff]
    %v336 = vld [vmem:[#allocation2 + $0xb0] sm:$0xff]
    %v337 = vld [vmem:[#allocation2 + $0xb8] sm:$0xff]
    %v338 = vld [vmem:[#allocation2 + $0xc0] sm:$0xff]
    %v339 = vld [vmem:[#allocation2 + $0xc8] sm:$0xff]
    %v340 = vld [vmem:[#allocation2 + $0xd0] sm:$0xff]
    %v341 = vld [vmem:[#allocation2 + $0xd8] sm:$0xff]
    %v342 = vld [vmem:[#allocation2 + $0xe0] sm:$0xff]
    %v343 = vld [vmem:[#allocation2 + $0xe8] sm:$0xff]
    %v344 = vld [vmem:[#allocation2 + $0xf0] sm:$0xff]
    %v345 = vld [vmem:[#allocation2 + $0xf8] sm:$0xff]
    %346 = vmatprep.subr.mxu0 0.0
    %347 = vmatpush1.msra.mxu0 %v329
    %348 = vmatprep.subr.mxu0 0.0
    %349 = vmatpush1.msra.mxu0 %v328
    %350 = vmatprep.subr.mxu0 0.0
    %351 = vmatpush1.msra.mxu0 %v327
    %352 = vmatprep.subr.mxu0 0.0
    %353 = vmatpush1.msra.mxu0 %v326
    %354 = vmatprep.subr.mxu0 0.0
    %355 = vmatpush1.msra.mxu0 %v325
    %356 = vmatprep.subr.mxu0 0.0
    %357 = vmatpush1.msra.mxu0 %v324
    %358 = vmatprep.subr.mxu0 0.0
    %359 = vmatpush1.msra.mxu0 %v323
    %360 = vmatprep.subr.mxu0 0.0
    %361 = vmatpush1.msra.mxu0 %v322
    %362 = vmatprep.subr.mxu0 0.0
    %363 = vmatpush1.msra.mxu0 %v321
    %364 = vmatprep.subr.mxu0 0.0
    %365 = vmatpush1.msra.mxu0 %v320
    %366 = vmatprep.subr.mxu0 0.0
    %367 = vmatpush1.msra.mxu0 %v319
    %368 = vmatprep.subr.mxu0 0.0
    %369 = vmatpush1.msra.mxu0 %v318
    %370 = vmatprep.subr.mxu0 0.0
    %371 = vmatpush1.msra.mxu0 %v317
    %372 = vmatprep.subr.mxu0 0.0
    %373 = vmatpush1.msra.mxu0 %v316
    %374 = vmatprep.subr.mxu0 0.0
    %375 = vmatpush1.msra.mxu0 %v315
    %376 = vmatprep.subr.mxu0 0.0
    %377 = vmatpush1.msra.mxu0 %v314
    %378 = vmatprep.subr.mxu0 0.0
    %379 = vmatpush2.msra.mxu0 %v345
    %380 = vmatprep.subr.mxu0 0.0
    %381 = vmatpush2.msra.mxu0 %v344
    %382 = vmatprep.subr.mxu0 0.0
    %383 = vmatpush2.msra.mxu0 %v343
    %384 = vmatprep.subr.mxu0 0.0
    %385 = vmatpush2.msra.mxu0 %v342
    %386 = vmatprep.subr.mxu0 0.0
    %387 = vmatpush2.msra.mxu0 %v341
    %388 = vmatprep.subr.mxu0 0.0
    %389 = vmatpush2.msra.mxu0 %v340
    %390 = vmatprep.subr.mxu0 0.0
    %391 = vmatpush2.msra.mxu0 %v339
    %392 = vmatprep.subr.mxu0 0.0
    %393 = vmatpush2.msra.mxu0 %v338
    %394 = vmatprep.subr.mxu0 0.0
    %395 = vmatpush2.msra.mxu0 %v337
    %396 = vmatprep.subr.mxu0 0.0
    %397 = vmatpush2.msra.mxu0 %v336
    %398 = vmatprep.subr.mxu0 0.0
    %399 = vmatpush2.msra.mxu0 %v335
    %400 = vmatprep.subr.mxu0 0.0
    %401 = vmatpush2.msra.mxu0 %v334
    %402 = vmatprep.subr.mxu0 0.0
    %403 = vmatpush2.msra.mxu0 %v333
    %404 = vmatprep.subr.mxu0 0.0
    %405 = vmatpush2.msra.mxu0 %v332
    %406 = vmatprep.subr.mxu0 0.0
    %407 = vmatpush2.msra.mxu0 %v331
    %408 = vmatprep.subr.mxu0 0.0
    %409 = vmatpush2.msra.mxu0 %v330
    %410 = vmatprep.mubr.f32.mxu0 %v311
    %411 = vmatmul.mubr.f32.gmra.mxu0 %v310
    %v412 = vpop.f32.mrf.mxu0
    %v413 = vadd.f32 0.0, %v412
    %v414 = vpop.f32.mrf.mxu0
    %415 = vmatprep.mubr.f32.mxu0 %v313
    %416 = vmatmul.mubr.f32.gmra.mxu0 %v312
    %v417 = vpop.f32.mrf.mxu0
    %v418 = vadd.f32 0.0, %v417
    %v419 = vpop.f32.mrf.mxu0
    %420 = vdwg.mxu0
    %v421 = vmul.f32 %v413, 11.313708
    %v422 = vmul.f32 %v418, 11.313708
    %v423 = vadd.f32 %v421, %v186
    %v424 = vadd.f32 %v422, %v290
    %425 = vst [vmem:[#allocation5] sm:$0xff] %v423
    %426 = vst [vmem:[#allocation5 + $0x8] sm:$0xff] %v424
    // Predicated region
    $region22: #{tpu_custom_call.1} parent=1 // pred_check
      _
    $region23: #{tpu_custom_call.1} parent=1 // pred_check_branch
      %428 = sbr.rel (0) target = $region25
    $region24: #{tpu_custom_call.1} parent=1 // pred_region
      %s430 = ssub.s32 256, 256
      %431 = vsyncadd [#allocation4], %s430
      %s432 = sshll.u32 [#allocation5], 4
      %s433 = int_to_ptr.vmem [resolvable:$true] %s432
      %438 = dma.vmem_to_hbm [thread:$0]  %s433, 256, %s4, [#allocation4], 128, 128, 8
    $region25: #{tpu_custom_call.1} parent=1 // pred_fallthru
      _
    // Predicated region
    $region26: #{tpu_custom_call.1} parent=1 // pred_check
      _
    $region27: #{tpu_custom_call.1} parent=1 // pred_check_branch
      %440 = sbr.rel (0) target = $region29
    $region28: #{tpu_custom_call.1} parent=1 // pred_region
      %441 = dma.done [#allocation4], 256
    $region29: #{tpu_custom_call.1} parent=1 // pred_fallthru
      _
    %442 = vsyncpa [#allocation3], 1
    %443 = vsyncpa [#allocation4], 1

</llo_original>
